<compile_context>
chip_gen: v6e
topology: v6e:2x2x1
jax: 0.10.0
libtpu: 0.0.40
codegen_flags: <defaults>
</compile_context>

<pallas_src>
import jax
import jax.numpy as jnp
from jax.experimental import pallas as pl
from jax.experimental.pallas import tpu as pltpu

_LANES = 128
_SUBLANE_ALIGN = 32  # multiple of packing factor for f32(8)/bf16(16)/int8(32)


def _relu_kernel(x_ref, o_ref):
    # Elementwise ReLU on the current VMEM tile (pure VPU op).
    o_ref[...] = jnp.maximum(x_ref[...], jnp.zeros((), x_ref.dtype))


def _round_up(v, m):
    return ((v + m - 1) // m) * m


def zeroparam_relu_forward(
    x,
    *,
    target_tile_bytes=8 * 1024 * 1024,   # ~8 MiB per input buffer
    min_pallas_bytes=2 * 1024 * 1024,    # below this, let XLA fuse the ReLU
    vmem_limit_bytes=48 << 20,
    force_pallas=False,
    donate_input=False,
):
    """Forward of ZeroparamWrapperClass(nn.ReLU(), relu_wrapper_fct()).

    x: array of any shape / float dtype. Returns ReLU(x), same shape/dtype.
    """
    orig_shape = x.shape
    orig_dtype = x.dtype
    total = int(x.size)
    itemsize = jnp.dtype(orig_dtype).itemsize

    if total == 0:
        return x

    # ---- small-input fast path: launch overhead + an extra HBM round trip
    # dwarf anything the kernel can save; let XLA fuse into the producer.
    if not force_pallas and total * itemsize < min_pallas_bytes:
        return jnp.maximum(x, jnp.zeros((), orig_dtype))

    # ---- lane-dense slab: pad only to a multiple of 128 (reshape requirement).
    rows = pl.cdiv(total, _LANES)
    lane_padded = rows * _LANES
    x_flat = x.reshape(-1)
    if lane_padded != total:
        x_flat = jnp.pad(x_flat, (0, lane_padded - total))
    x2 = x_flat.reshape(rows, _LANES)

    # ---- tile sizing by bytes, rounded to the sublane-packing multiple.
    tr = target_tile_bytes // (_LANES * itemsize)
    tr = max(_SUBLANE_ALIGN, (tr // _SUBLANE_ALIGN) * _SUBLANE_ALIGN)

    # Keep >= 2 grid steps whenever the input is big enough, so a v7x chip
    # can shard the "parallel" axis across both TensorCores.
    if rows >= 2 * _SUBLANE_ALIGN:
        half = _round_up(pl.cdiv(rows, 2), _SUBLANE_ALIGN)
        tr = min(tr, half)

    if tr >= rows:
        tr = rows  # single full-extent block (block == array dims is legal)

    grid = (pl.cdiv(rows, tr),)

    kwargs = {}
    if donate_input:
        # Caller promises x (and hence x2's buffer) is dead after this call.
        kwargs["input_output_aliases"] = {0: 0}

    out2 = pl.pallas_call(
        _relu_kernel,
        out_shape=jax.ShapeDtypeStruct((rows, _LANES), orig_dtype),
        grid=grid,
        in_specs=[pl.BlockSpec((tr, _LANES), lambda i: (i, 0))],
        out_specs=pl.BlockSpec((tr, _LANES), lambda i: (i, 0)),
        compiler_params=pltpu.CompilerParams(
            dimension_semantics=("parallel",),
            vmem_limit_bytes=vmem_limit_bytes,
        ),
        cost_estimate=pl.CostEstimate(
            flops=lane_padded,
            transcendentals=0,
            bytes_accessed=2 * lane_padded * itemsize,
        ),
        **kwargs,
    )(x2)

    out_flat = out2.reshape(-1)
    if lane_padded != total:
        out_flat = out_flat[:total]
    return out_flat.reshape(orig_shape)


if __name__ == "__main__":
    key = jax.random.PRNGKey(0)

    # Small NCHW input consistent with typical usage (wrapping nn.ReLU()
    # inside a conv net): batch=2, channels=4, spatial=16x16.
    # force_pallas=True so the Pallas path is actually exercised here.
    x = jax.random.normal(key, (2, 4, 16, 16), dtype=jnp.float32)
    y = zeroparam_relu_forward(x, force_pallas=True)
    jax.block_until_ready(y)
    y_ref = jnp.maximum(x, 0.0)
    assert y.shape == x.shape and y.dtype == x.dtype
    assert jnp.allclose(y, y_ref), "mismatch vs reference ReLU (NCHW case)"

    # Ragged case (exercises pad-to-128 + output slice: 945 elems, not /128).
    x2 = jax.random.normal(jax.random.PRNGKey(1), (3, 5, 7, 9),
                           dtype=jnp.float32)
    y2 = zeroparam_relu_forward(x2, force_pallas=True)
    jax.block_until_ready(y2)
    assert jnp.allclose(y2, jnp.maximum(x2, 0.0)), "mismatch (ragged case)"

    # Medium case: exercises a multi-step grid (>=2 steps -> both v7x TCs).
    x3 = jax.random.normal(jax.random.PRNGKey(2), (2, 64, 64, 64),
                           dtype=jnp.float32)
    y3 = zeroparam_relu_forward(x3, force_pallas=True)
    jax.block_until_ready(y3)
    assert jnp.allclose(y3, jnp.maximum(x3, 0.0)), "mismatch (multi-tile case)"

    # Fast-path sanity (default: small inputs bypass Pallas entirely).
    y_fast = zeroparam_relu_forward(x)
    jax.block_until_ready(y_fast)
    assert jnp.allclose(y_fast, y_ref), "mismatch (fast path)"

    print("KERNEL_OK")
</pallas_src>

<mosaic_0001>
module attributes {stable_mosaic.version = 11 : i64} {
  func.func @_relu_kernel(%arg0: i32, %arg1: memref<16x128xf32, #tpu.memory_space<vmem>>, %arg2: memref<16x128xf32, #tpu.memory_space<vmem>>) attributes {dimension_semantics = [#tpu.dimension_semantics<parallel>], iteration_bounds = array<i64: 1>, scalar_prefetch = 0 : i64, scratch_operands = 0 : i64, tpu.core_type = #tpu.core_type<tc>, window_params = [{transform_indices = @transform_0, window_bounds = array<i64: 16, 128>}, {transform_indices = @transform_1, window_bounds = array<i64: 16, 128>}]} {
    %c0 = arith.constant 0 : index
    %c0_0 = arith.constant 0 : index
    %0 = vector.load %arg1[%c0, %c0_0] : memref<16x128xf32, #tpu.memory_space<vmem>>, vector<16x128xf32>
    %cst = arith.constant 0.000000e+00 : f32
    %1 = vector.broadcast %cst : f32 to vector<16x128xf32>
    %2 = arith.maximumf %0, %1 : vector<16x128xf32>
    %c0_1 = arith.constant 0 : index
    %c0_2 = arith.constant 0 : index
    %3 = vector.load %arg2[%c0_1, %c0_2] : memref<16x128xf32, #tpu.memory_space<vmem>>, vector<16x128xf32>
    tpu.vector_store %arg2[%c0_1, %c0_2], %2 {strides = array<i32>} : memref<16x128xf32, #tpu.memory_space<vmem>>, vector<16x128xf32>,
    return
  }
  func.func @transform_0(%arg0: i32) -> (i32, i32) {
    %c0_i32 = arith.constant 0 : i32
    %c0_i32_0 = arith.constant 0 : i32
    return %arg0, %c0_i32 : i32, i32
  }
  func.func @transform_1(%arg0: i32) -> (i32, i32) {
    %c0_i32 = arith.constant 0 : i32
    %c0_i32_0 = arith.constant 0 : i32
    return %arg0, %c0_i32 : i32, i32
  }
}

</mosaic_0001>

<llo_original>
// kernel: tpu_custom_call.1
$region0: #{tpu_custom_call.1}
  #allocation0 [shape = 'u32[]', space=smem, size = 0x4, offset = 0x4, fixed_abs, tag = 'smem constant byte address 0x4 - core index']
  #allocation1 [shape = 'u32[144,128]{1,0:T(1,128)}', space=vmem, size = 0x12000, scoped, tag = 'internal scratch']
  %s0 = inlined_call_operand.hbm [shape: f32[16,128], index: 0, kind: input, shape index: {}]
  %s1 = inlined_call_operand.hbm [shape: f32[16,128], index: 1, kind: output, shape index: {}]
  %s2 = sld [smem:[#allocation0]]
  $region18: #{tpu_custom_call.1} parent=0
    _
  %s4 = ssub.s32 1, %s2
  %s5 = scalar_select 0, %s4, %s2
  $region1: #{tpu_custom_call.1} parent=0
    #allocation2 [shape = 'u8[8192]{0}', space=vmem, size = 0x2000, scoped, tag = 'input window, operand 0, single buffered']
    #allocation3 [shape = 's32[1]{0}', space=sflag, size = 0x4, scoped, tag = 'scoped memory for tpu_custom_call.1']
    #allocation4 [shape = 's32[1]{0}', space=sflag, size = 0x4, scoped, tag = 'scoped memory for tpu_custom_call.1']
    #allocation5 [shape = 'u8[8192]{0}', space=vmem, size = 0x2000, scoped, tag = 'output window, operand 0, single buffered']
    %6 = vsyncpa [#allocation3], 0
    %7 = vsyncpa [#allocation4], 0
    // Predicated region
    $region2: #{tpu_custom_call.1} parent=1 // pred_check
      _
    $region3: #{tpu_custom_call.1} parent=1 // pred_check_branch
      %9 = sbr.rel (0) target = $region5
    $region4: #{tpu_custom_call.1} parent=1 // pred_region
      %s11 = ssub.s32 256, 256
      %12 = vsyncadd [#allocation3], %s11
      %s13 = sshll.u32 [#allocation2], 4
      %s14 = int_to_ptr.vmem [resolvable:$true] %s13
      %19 = dma.hbm_to_vmem [thread:$0]  %s0, 256, %s14, [#allocation3], 128, 128, 8
    $region5: #{tpu_custom_call.1} parent=1 // pred_fallthru
      _
    // Predicated region
    $region6: #{tpu_custom_call.1} parent=1 // pred_check
      _
    $region7: #{tpu_custom_call.1} parent=1 // pred_check_branch
      %21 = sbr.rel (0) target = $region9
    $region8: #{tpu_custom_call.1} parent=1 // pred_region
      %22 = dma.done [#allocation3], 256
    $region9: #{tpu_custom_call.1} parent=1 // pred_fallthru
      _
    %v23 = vld [vmem:[#allocation2] sm:$0xff]
    %v24 = vld [vmem:[#allocation2 + $0x8] sm:$0xff]
    %v25 = vmax.f32 %v23, 0.0
    %v26 = vmax.f32 %v24, 0.0
    %27 = vst [vmem:[#allocation5] sm:$0xff] %v25
    %28 = vst [vmem:[#allocation5 + $0x8] sm:$0xff] %v26
    // Predicated region
    $region10: #{tpu_custom_call.1} parent=1 // pred_check
      _
    $region11: #{tpu_custom_call.1} parent=1 // pred_check_branch
      %30 = sbr.rel (0) target = $region13
    $region12: #{tpu_custom_call.1} parent=1 // pred_region
      %s32 = ssub.s32 256, 256
      %33 = vsyncadd [#allocation4], %s32
      %s34 = sshll.u32 [#allocation5], 4
      %s35 = int_to_ptr.vmem [resolvable:$true] %s34
      %40 = dma.vmem_to_hbm [thread:$0]  %s35, 256, %s1, [#allocation4], 128, 128, 8
    $region13: #{tpu_custom_call.1} parent=1 // pred_fallthru
      _
    // Predicated region
    $region14: #{tpu_custom_call.1} parent=1 // pred_check
      _
    $region15: #{tpu_custom_call.1} parent=1 // pred_check_branch
      %42 = sbr.rel (0) target = $region17
    $region16: #{tpu_custom_call.1} parent=1 // pred_region
      %43 = dma.done [#allocation4], 256
    $region17: #{tpu_custom_call.1} parent=1 // pred_fallthru
      _
    %44 = vsyncpa [#allocation3], 1
    %45 = vsyncpa [#allocation4], 1

</llo_original>
